<compile_context>
chip_gen: v5e
topology: v5e:2x2
jax: 0.10.0
libtpu: 0.0.40
codegen_flags: <defaults>
</compile_context>

<pallas_src>
import functools

import jax
import jax.numpy as jnp
from jax.experimental import pallas as pl
from jax.experimental.pallas import tpu as pltpu


def _pick_tile(n, candidates):
    """Largest candidate that exactly divides n, else the full extent."""
    for c in candidates:
        if c <= n and n % c == 0:
            return c
    return n


def _pick_tq(q):
    """Query tile: as large as possible (fewer re-streams of the passage matrix), but
    capped at Q//2 so the 'parallel' query grid axis keeps >= 2 steps and both v7x
    TensorCores get work; sublane-aligned candidates."""
    cap = max(q // 2, 8)
    for c in (512, 256, 128, 64, 32, 16, 8):
        if c <= cap and q % c == 0:
            return c
    return q


# ---------------------------------------------------------------------------
# Pallas kernel 1: fused projection head (+ optional L2 normalize) for the
# tied synthetic encoder.  One call covers query AND passage pooled states.
# ---------------------------------------------------------------------------
def _proj_kernel(x_ref, w_ref, b_ref, o_ref, *, normalize):
    # bf16 @ bf16 -> f32 on the MXU; bias / normalize math stays in f32 (VPU/EUP).
    acc = jnp.dot(x_ref[...], w_ref[...], preferred_element_type=jnp.float32)
    acc = acc + b_ref[...].astype(jnp.float32)
    if normalize:  # F.normalize(reps, dim=1)
        inv = jax.lax.rsqrt(
            jnp.maximum(jnp.sum(acc * acc, axis=-1, keepdims=True), 1e-24)
        )
        acc = acc * inv
    o_ref[...] = acc.astype(o_ref.dtype)


def pallas_project(pooled, w, b, *, normalize=False, out_dtype=jnp.bfloat16):
    B, H = pooled.shape
    _, D = w.shape
    tb = _pick_tile(B, (512, 256, 128, 64, 32, 16, 8))
    grid = (B // tb,)

    # pooled / w are already bf16 when produced by encode_pooled (no extra HBM copy);
    # astype on a matching dtype is a no-op under jit.
    x = pooled.astype(jnp.bfloat16)
    wq = w.astype(jnp.bfloat16)
    bq = b.reshape(1, D).astype(jnp.float32)

    return pl.pallas_call(
        functools.partial(_proj_kernel, normalize=normalize),
        out_shape=jax.ShapeDtypeStruct((B, D), out_dtype),
        grid=grid,
        in_specs=[
            pl.BlockSpec((tb, H), lambda i: (i, 0)),
            pl.BlockSpec((H, D), lambda i: (0, 0)),   # same block every step -> no re-DMA
            pl.BlockSpec((1, D), lambda i: (0, 0)),
        ],
        out_specs=pl.BlockSpec((tb, D), lambda i: (i, 0)),
        compiler_params=pltpu.CompilerParams(
            dimension_semantics=("parallel",),
            vmem_limit_bytes=32 * 1024 * 1024,
        ),
    )(x, wq, bq)


# ---------------------------------------------------------------------------
# Pallas kernel 2: DR4RecModel scoring + per-row logsumexp
#   scores[i, j] = <q_i, p_j>                              (stored bf16, optional)
#   lse[i]       = logsumexp_j(scores[i, :])               (f32)
# The CE target logit (column i * train_n_passages) is a tiny Q*D gather+reduce
# done OUTSIDE the kernel; loss = mean(lse - target_logit) over the global Q.
# ---------------------------------------------------------------------------
def _score_lse_kernel(q_ref, p_ref, *refs, write_scores):
    if write_scores:
        scores_ref, lse_ref, m_sc, l_sc = refs
    else:
        lse_ref, m_sc, l_sc = refs

    kv = pl.program_id(1)
    n_kv = pl.num_programs(1)

    @pl.when(kv == 0)
    def _():
        m_sc[...] = jnp.full(m_sc.shape, -jnp.inf, dtype=jnp.float32)
        l_sc[...] = jnp.zeros(l_sc.shape, dtype=jnp.float32)

    # bf16 MXU matmul, contraction on the last dim of both operands (no p.T transpose).
    s = jax.lax.dot_general(
        q_ref[...], p_ref[...],
        dimension_numbers=(((1,), (1,)), ((), ())),
        preferred_element_type=jnp.float32,
    )  # [tq, tp] f32

    if write_scores:
        scores_ref[...] = s.astype(scores_ref.dtype)   # bf16 store: half the HBM writeback

    # --- online (flash-style) logsumexp over the streamed passage tiles (f32) ---
    m_prev = m_sc[...]
    m_new = jnp.maximum(m_prev, jnp.max(s, axis=-1, keepdims=True))
    l_sc[...] = l_sc[...] * jnp.exp(m_prev - m_new) + jnp.sum(
        jnp.exp(s - m_new), axis=-1, keepdims=True
    )
    m_sc[...] = m_new

    @pl.when(kv == n_kv - 1)
    def _():
        lse_ref[...] = m_sc[...] + jnp.log(l_sc[...])


def dr4rec_score_and_loss(q_reps, p_reps, *, train_n_passages,
                          return_scores=True, tq=None, tp=None):
    Q, D = q_reps.shape
    P, Dp = p_reps.shape
    assert D == Dp
    # torch.nn.CrossEntropyLoss would raise if a target index is out of range;
    # guard against silently-wrong target logits.
    assert (Q - 1) * train_n_passages < P, "target index exceeds number of passages"

    if tq is None:
        tq = _pick_tq(Q)
    if tp is None:
        # lane-dense scores store: tp a multiple of 128 (prefer 256+ for the 256-wide MXU
        # on v6e/v7x), or the full P.  VMEM stays well under the 32 MiB limit (v7x-safe).
        tp = _pick_tile(P, (1024, 512, 256, 128))
    assert Q % tq == 0 and P % tp == 0
    nq, npas = Q // tq, P // tp

    q = q_reps.astype(jnp.bfloat16)
    p = p_reps.astype(jnp.bfloat16)

    kernel = functools.partial(_score_lse_kernel, write_scores=return_scores)

    out_shape = [jax.ShapeDtypeStruct((Q, 1), jnp.float32)]            # per-row logsumexp
    out_specs = [pl.BlockSpec((tq, 1), lambda i, j: (i, 0))]
    if return_scores:
        out_shape = [jax.ShapeDtypeStruct((Q, P), jnp.bfloat16)] + out_shape
        out_specs = [pl.BlockSpec((tq, tp), lambda i, j: (i, j))] + out_specs

    outs = pl.pallas_call(
        kernel,
        out_shape=tuple(out_shape),
        grid=(nq, npas),
        in_specs=[
            pl.BlockSpec((tq, D), lambda i, j: (i, 0)),
            # streamed passage tiles: 3-deep buffering hides DMA jitter behind the short
            # per-tile MXU + softmax work at small rep dim.
            pl.BlockSpec((tp, D), lambda i, j: (j, 0), pipeline_mode=pl.Buffered(3)),
        ],
        out_specs=tuple(out_specs),
        scratch_shapes=[
            pltpu.VMEM((tq, 1), jnp.float32),   # running max  m_i
            pltpu.VMEM((tq, 1), jnp.float32),   # running sum  l_i
        ],
        compiler_params=pltpu.CompilerParams(
            dimension_semantics=("parallel", "arbitrary"),
            vmem_limit_bytes=32 * 1024 * 1024,
        ),
    )(q, p)

    scores = outs[0] if return_scores else None
    lse = outs[-1][:, 0]                              # [Q] f32

    # --- hoisted target-logit: column i * train_n_passages, a tiny Q*D gather+reduce.
    tgt_idx = jnp.arange(Q, dtype=jnp.int32) * train_n_passages
    p_tgt = jnp.take(p, tgt_idx, axis=0)              # [Q, D] bf16
    t_logit = jnp.sum(q.astype(jnp.float32) * p_tgt.astype(jnp.float32), axis=-1)

    loss = jnp.mean(lse - t_logit)                    # mean over the GLOBAL query count
    return scores, loss


# ---------------------------------------------------------------------------
# Synthetic (tied) encoder replacing lm_q / lm_p: embedding -> mask -> 'first'
# pooling; projection (+ optional normalize) is fused into ONE Pallas call
# shared by query and passage.  Emits bf16 pooled states directly (embedding
# table stored bf16) so no extra astype round-trip before the Pallas kernel.
# ---------------------------------------------------------------------------
def encode_pooled(params, input_ids, attention_mask):
    # TODO(synk): stands in for the external TASTEModel/T5 encoder (black-box PreTrainedModel).
    hidden = jnp.take(params["emb"], input_ids, axis=0)                        # [B, L, H] bf16
    hidden = hidden * attention_mask[..., None].astype(hidden.dtype)           # use the mask
    pooled = hidden[:, 0, :]                                                   # pooling='first'
    return hidden, pooled


def dr4rec_forward(params, query, passage, *, train_n_passages, normalize=False,
                   return_scores=True, tq=None, tp=None):
    _, q_pooled = encode_pooled(params, *query)      # encode_query  (tied lm_q)
    _, p_pooled = encode_pooled(params, *passage)    # encode_passage (tied lm_p, head=None)

    # One fused projection (+ optional L2 normalize) over [query; passage]:
    # avoids a second tiny pallas_call and an extra HBM round-trip of the reps.
    nq = q_pooled.shape[0]
    reps = pallas_project(
        jnp.concatenate([q_pooled, p_pooled], axis=0),
        params["proj_w"], params["proj_b"], normalize=normalize,
    )
    q_reps, p_reps = reps[:nq], reps[nq:]

    scores, loss = dr4rec_score_and_loss(
        q_reps, p_reps, train_n_passages=train_n_passages,
        return_scores=return_scores, tq=tq, tp=tp,
    )
    # TODO(synk): negatives_x_device all-gather and loss *= world_size are distributed-only
    #             (torch.distributed) and omitted in this single-device version.
    return loss, scores, q_reps, p_reps


if __name__ == "__main__":
    key = jax.random.PRNGKey(0)
    k_emb, k_w, k_b, k_q, k_p, k_qm, k_pm = jax.random.split(key, 7)

    VOCAB, SEQ, HIDDEN, REP_DIM = 128, 8, 128, 128
    NUM_QUERIES, TRAIN_N_PASSAGES = 32, 8
    NUM_PASSAGES = NUM_QUERIES * TRAIN_N_PASSAGES      # 256

    params = {
        # embedding / projection weights stored bf16 so pooled activations are bf16 end-to-end
        "emb": (0.02 * jax.random.normal(k_emb, (VOCAB, HIDDEN), jnp.float32)
                ).astype(jnp.bfloat16),
        "proj_w": (0.05 * jax.random.normal(k_w, (HIDDEN, REP_DIM), jnp.float32)
                   ).astype(jnp.bfloat16),
        "proj_b": 0.01 * jax.random.normal(k_b, (REP_DIM,), jnp.float32),
    }

    q_ids = jax.random.randint(k_q, (NUM_QUERIES, SEQ), 0, VOCAB, dtype=jnp.int32)
    p_ids = jax.random.randint(k_p, (NUM_PASSAGES, SEQ), 0, VOCAB, dtype=jnp.int32)
    q_mask = (jax.random.uniform(k_qm, (NUM_QUERIES, SEQ)) > 0.2).astype(jnp.int32)
    p_mask = (jax.random.uniform(k_pm, (NUM_PASSAGES, SEQ)) > 0.2).astype(jnp.int32)
    q_mask = q_mask.at[:, 0].set(1)
    p_mask = p_mask.at[:, 0].set(1)

    # tq=16 (bf16-packed sublane-aligned), tp=128 -> grid (2, 2): exercises both the
    # parallel Q axis AND the streamed (online-logsumexp) passage axis at demo shapes.
    loss, scores, q_reps, p_reps = dr4rec_forward(
        params, (q_ids, q_mask), (p_ids, p_mask),
        train_n_passages=TRAIN_N_PASSAGES, normalize=False,
        return_scores=True, tq=16, tp=128,
    )
    jax.block_until_ready((loss, scores, q_reps, p_reps))

    # ---- correctness check: scores + CE loss against plain-JAX f32 reference ----
    qf = q_reps.astype(jnp.float32)
    pf = p_reps.astype(jnp.float32)
    ref_scores = qf @ pf.T
    tgt = jnp.arange(NUM_QUERIES) * TRAIN_N_PASSAGES
    ref_loss = jnp.mean(
        jax.nn.logsumexp(ref_scores, axis=-1)
        - ref_scores[jnp.arange(NUM_QUERIES), tgt]
    )
    # scores are stored in bf16 -> allow bf16 rounding on top of f32 matmul differences
    assert jnp.allclose(scores.astype(jnp.float32), ref_scores,
                        atol=5e-3, rtol=1e-2), "scores mismatch"
    assert jnp.allclose(loss, ref_loss, atol=1e-3), "loss mismatch"

    # ---- correctness check: projected reps vs plain-JAX on the same bf16 inputs ----
    _, pq = encode_pooled(params, q_ids, q_mask)
    _, pp = encode_pooled(params, p_ids, p_mask)
    pooled = jnp.concatenate([pq, pp], axis=0).astype(jnp.float32)
    w32 = params["proj_w"].astype(jnp.float32)
    ref_reps = pooled @ w32 + params["proj_b"]
    reps_all = jnp.concatenate([qf, pf], axis=0)
    assert jnp.allclose(reps_all, ref_reps, atol=2e-3), "reps mismatch"

    print("KERNEL_OK")
</pallas_src>

<mosaic_0001>
module attributes {stable_mosaic.version = 11 : i64} {
  func.func @_proj_kernel(%arg0: i32, %arg1: memref<32x128xbf16, #tpu.memory_space<vmem>>, %arg2: memref<128x128xbf16, #tpu.memory_space<vmem>>, %arg3: memref<1x128xf32, #tpu.memory_space<vmem>>, %arg4: memref<32x128xbf16, #tpu.memory_space<vmem>>) attributes {dimension_semantics = [#tpu.dimension_semantics<parallel>], iteration_bounds = array<i64: 9>, scalar_prefetch = 0 : i64, scratch_operands = 0 : i64, tpu.core_type = #tpu.core_type<tc>, window_params = [{transform_indices = @transform_0, window_bounds = array<i64: 32, 128>}, {pipeline_mode = #tpu.pipeline_mode<synchronous>, transform_indices = @transform_1, window_bounds = array<i64: 128, 128>}, {pipeline_mode = #tpu.pipeline_mode<synchronous>, transform_indices = @transform_2, window_bounds = array<i64: 1, 128>}, {transform_indices = @transform_3, window_bounds = array<i64: 32, 128>}]} {
    %c0 = arith.constant 0 : index
    %c0_0 = arith.constant 0 : index
    %0 = vector.load %arg1[%c0, %c0_0] : memref<32x128xbf16, #tpu.memory_space<vmem>>, vector<32x128xbf16>
    %c0_1 = arith.constant 0 : index
    %c0_2 = arith.constant 0 : index
    %1 = vector.load %arg2[%c0_1, %c0_2] : memref<128x128xbf16, #tpu.memory_space<vmem>>, vector<128x128xbf16>
    %cst = arith.constant dense<0.000000e+00> : vector<32x128xf32>
    %2 = tpu.matmul %0, %1, %cst {dimension_numbers = #tpu.dot_dimension_numbers<[1], [0], [0], [1], [0, 0, 1, 1], [], []>} : vector<32x128xbf16>, vector<128x128xbf16>, vector<32x128xf32> -> vector<32x128xf32>
    %c0_3 = arith.constant 0 : index
    %c0_4 = arith.constant 0 : index
    %3 = vector.load %arg3[%c0_3, %c0_4] : memref<1x128xf32, #tpu.memory_space<vmem>>, vector<1x128xf32>
    %4 = vector.broadcast %3 : vector<1x128xf32> to vector<32x128xf32>
    %5 = arith.addf %2, %4 : vector<32x128xf32>
    %6 = arith.truncf %5 : vector<32x128xf32> to vector<32x128xbf16>
    %c0_5 = arith.constant 0 : index
    %c0_6 = arith.constant 0 : index
    %7 = vector.load %arg4[%c0_5, %c0_6] : memref<32x128xbf16, #tpu.memory_space<vmem>>, vector<32x128xbf16>
    tpu.vector_store %arg4[%c0_5, %c0_6], %6 {strides = array<i32>} : memref<32x128xbf16, #tpu.memory_space<vmem>>, vector<32x128xbf16>,
    return
  }
  func.func @transform_0(%arg0: i32) -> (i32, i32) {
    %c0_i32 = arith.constant 0 : i32
    %c0_i32_0 = arith.constant 0 : i32
    return %arg0, %c0_i32 : i32, i32
  }
  func.func @transform_1(%arg0: i32) -> (i32, i32) {
    %c0_i32 = arith.constant 0 : i32
    %c0_i32_0 = arith.constant 0 : i32
    %c0_i32_1 = arith.constant 0 : i32
    return %c0_i32, %c0_i32_0 : i32, i32
  }
  func.func @transform_2(%arg0: i32) -> (i32, i32) {
    %c0_i32 = arith.constant 0 : i32
    %c0_i32_0 = arith.constant 0 : i32
    %c0_i32_1 = arith.constant 0 : i32
    return %c0_i32, %c0_i32_0 : i32, i32
  }
  func.func @transform_3(%arg0: i32) -> (i32, i32) {
    %c0_i32 = arith.constant 0 : i32
    %c0_i32_0 = arith.constant 0 : i32
    return %arg0, %c0_i32 : i32, i32
  }
}

</mosaic_0001>

<llo_original>
// kernel: tpu_custom_call.1
$region0: #{tpu_custom_call.1}
  #allocation0 [shape = 'u32[]', space=smem, size = 0x4, offset = 0x4, fixed_abs, tag = 'smem constant byte address 0x4 - core index']
  #allocation1 [shape = 'u32[72,128]{1,0:T(1,128)}', space=vmem, size = 0x9000, scoped, tag = 'internal scratch']
  %s0 = inlined_call_operand.hbm [shape: bf16[288,128], index: 0, kind: input, shape index: {}]
  %s1 = inlined_call_operand.hbm [shape: bf16[128,128], index: 1, kind: input, shape index: {}]
  %s2 = inlined_call_operand.vmem [shape: f32[1,128], index: 2, kind: input, shape index: {}]
  %s3 = inlined_call_operand.hbm [shape: bf16[288,128], index: 3, kind: output, shape index: {}]
  %s4 = sld [smem:[#allocation0]]
  $region53: #{tpu_custom_call.1} parent=0
    _
  %s6 = ssub.s32 1, %s4
  %s7 = scalar_select 0, %s6, %s4
  $region1: #{tpu_custom_call.1} parent=0
    #allocation2 [shape = 'u8[16384]{0}', space=vmem, size = 0x4000, scoped, tag = 'input window, operand 0']
    #allocation3 [shape = 's32[2]{0}', space=sflag, size = 0x8, scoped, tag = 'scoped memory for tpu_custom_call.1']
    #allocation4 [shape = 's32[2]{0}', space=sflag, size = 0x8, scoped, tag = 'scoped memory for tpu_custom_call.1']
    #allocation5 [shape = 'u8[32768]{0}', space=vmem, size = 0x8000, scoped, tag = 'input window, operand 1, single buffered']
    #allocation6 [shape = 's32[1]{0}', space=sflag, size = 0x4, scoped, tag = 'scoped memory for tpu_custom_call.1']
    #allocation7 [shape = 'u8[16384]{0}', space=vmem, size = 0x4000, scoped, tag = 'output window, operand 0']
    %8 = vsyncpa [#allocation3], 0
    %s9 = scalar_lea.sflag [#allocation3], 1
    %10 = vsyncpa %s9, 0
    %11 = vsyncpa [#allocation6], 0
    %12 = vsyncpa [#allocation4], 0
    %s13 = scalar_lea.sflag [#allocation4], 1
    %14 = vsyncpa %s13, 0
    loop: start=0, step=1, limit=11
    $region2: #{tpu_custom_call.1} parent=1 // loop_pre_header
      _
    $region3: #{tpu_custom_call.1} parent=1 // loop_header
      %s16 = sphi 0, %s20
      %p17 = scmp.ge.s32.totalorder %s16, 11
      %s26 = sphi 0, %s28
      %s29 = sphi 0, %s26
      %s30 = sphi 0, %s29
      %s46 = sphi 0, %s30
      %s50 = sphi 0, %s50
      %s52 = sphi 0, %s50
      %s53 = sphi 0, %s52
      %s67 = sphi 0, %s53
      %s71 = sphi 0, %s71
      %s73 = sphi 0, %s71
      %s74 = sphi 0, %s73
      %s88 = sphi 0, %s74
      %s94 = sphi 0, %s96
      %s97 = sphi 0, %s94
      %s98 = sphi 0, %s97
      %s114 = sphi 0, %s98
    $region4: #{tpu_custom_call.1} parent=1 // loop_header_branch
      %19 = sbr.rel (%p17) target = $region8
    $region5: #{tpu_custom_call.1} parent=1 // loop_body
      %s21 = ssub.s32 %s16, 1
      %s22 = ssub.s32 %s16, 2
      %s23 = sadd.s32 %s16, 1
      %s24 = ssub.s32 %s16, %s23
      %p25 = scmp.eq.s32.totalorder %s24, 0
      %s27 = sadd.s32 %s26, 1
      %s28 = scalar_select %p25, %s26, %s27
      %p31 = pneg %p25
      %p32 = scmp.eq.s32.totalorder %s16, 8
      %p33 = por %p31, %p32
      %p34 = scmp.ne.s32.totalorder %s26, %s29
      %p35 = scmp.eq.s32.totalorder %s16, 0
      %p36 = por %p34, %p35
      %p37 = scmp.ne.s32.totalorder %s26, %s29
      %p38 = scmp.eq.s32.totalorder %s21, 8
      %p39 = por %p37, %p38
      %p40 = scmp.ne.s32.totalorder %s29, %s30
      %p41 = scmp.eq.s32.totalorder %s21, 0
      %p42 = por %p40, %p41
      %p43 = scmp.ne.s32.totalorder %s29, %s30
      %p44 = scmp.eq.s32.totalorder %s22, 8
      %p45 = por %p43, %p44
      %p47 = scmp.ne.s32.totalorder %s30, %s46
      %p48 = scmp.eq.s32.totalorder %s22, 0
      %p49 = por %p47, %p48
      %s51 = sadd.s32 %s50, 1
      %p54 = scmp.eq.s32.totalorder %s16, 8
      %p55 = scmp.ne.s32.totalorder %s50, %s52
      %p56 = scmp.eq.s32.totalorder %s16, 0
      %p57 = por %p55, %p56
      %p58 = scmp.ne.s32.totalorder %s50, %s52
      %p59 = scmp.eq.s32.totalorder %s21, 8
      %p60 = por %p58, %p59
      %p61 = scmp.ne.s32.totalorder %s52, %s53
      %p62 = scmp.eq.s32.totalorder %s21, 0
      %p63 = por %p61, %p62
      %p64 = scmp.ne.s32.totalorder %s52, %s53
      %p65 = scmp.eq.s32.totalorder %s22, 8
      %p66 = por %p64, %p65
      %p68 = scmp.ne.s32.totalorder %s53, %s67
      %p69 = scmp.eq.s32.totalorder %s22, 0
      %p70 = por %p68, %p69
      %s72 = sadd.s32 %s71, 1
      %p75 = scmp.eq.s32.totalorder %s16, 8
      %p76 = scmp.ne.s32.totalorder %s71, %s73
      %p77 = scmp.eq.s32.totalorder %s16, 0
      %p78 = por %p76, %p77
      %p79 = scmp.ne.s32.totalorder %s71, %s73
      %p80 = scmp.eq.s32.totalorder %s21, 8
      %p81 = por %p79, %p80
      %p82 = scmp.ne.s32.totalorder %s73, %s74
      %p83 = scmp.eq.s32.totalorder %s21, 0
      %p84 = por %p82, %p83
      %p85 = scmp.ne.s32.totalorder %s73, %s74
      %p86 = scmp.eq.s32.totalorder %s22, 8
      %p87 = por %p85, %p86
      %p89 = scmp.ne.s32.totalorder %s74, %s88
      %p90 = scmp.eq.s32.totalorder %s22, 0
      %p91 = por %p89, %p90
      %s92 = ssub.s32 %s16, %s23
      %p93 = scmp.eq.s32.totalorder %s92, 0
      %s95 = sadd.s32 %s94, 1
      %s96 = scalar_select %p93, %s94, %s95
      %p99 = pneg %p93
      %p100 = scmp.eq.s32.totalorder %s16, 8
      %p101 = por %p99, %p100
      %p102 = scmp.ne.s32.totalorder %s94, %s97
      %p103 = scmp.eq.s32.totalorder %s16, 0
      %p104 = por %p102, %p103
      %p105 = scmp.ne.s32.totalorder %s94, %s97
      %p106 = scmp.eq.s32.totalorder %s21, 8
      %p107 = por %p105, %p106
      %p108 = scmp.ne.s32.totalorder %s97, %s98
      %p109 = scmp.eq.s32.totalorder %s21, 0
      %p110 = por %p108, %p109
      %p111 = scmp.ne.s32.totalorder %s97, %s98
      %p112 = scmp.eq.s32.totalorder %s22, 8
      %p113 = por %p111, %p112
      %p115 = scmp.ne.s32.totalorder %s98, %s114
      %p116 = scmp.eq.s32.totalorder %s22, 0
      %p117 = por %p115, %p116
      %p118 = scmp.le.s32.totalorder 1, %s16
      %p119 = scmp.lt.s32.totalorder %s16, 10
      %p120 = pnand %p118, %p119
      %p121 = pneg %p120
      // Predicated region
      $region9: #{tpu_custom_call.1} parent=5 // pred_check
        _
      $region10: #{tpu_custom_call.1} parent=5 // pred_check_branch
        %123 = sbr.rel (%p120) target = $region12
      $region11: #{tpu_custom_call.1} parent=5 // pred_region
        %s124 = ssub.s32 %s16, 1
        // Predicated region
        $region13: #{tpu_custom_call.1} parent=11 // pred_check
          %p125 = pneg %p63
        $region14: #{tpu_custom_call.1} parent=11 // pred_check_branch
          %127 = sbr.rel (%p125) target = $region16
        $region15: #{tpu_custom_call.1} parent=11 // pred_region
          %129 = vsyncadd [#allocation6], 0
          %s130 = sshll.u32 %s1, 4
          %s131 = int_to_ptr.hbm [resolvable:$true] %s130
          %s132 = sshll.u32 [#allocation5], 4
          %s133 = int_to_ptr.vmem [resolvable:$true] %s132
          %138 = dma.hbm_to_vmem [thread:$0]  %s131, 1024, %s133, [#allocation6], 64, 64, 4
        $region16: #{tpu_custom_call.1} parent=11 // pred_fallthru
          _
        // Predicated region
        $region17: #{tpu_custom_call.1} parent=11 // pred_check
          %p139 = pneg %p84
        $region18: #{tpu_custom_call.1} parent=11 // pred_check_branch
          %141 = sbr.rel (%p139) target = $region20
        $region19: #{tpu_custom_call.1} parent=11 // pred_region
          _
        $region20: #{tpu_custom_call.1} parent=11 // pred_fallthru
          _
      $region12: #{tpu_custom_call.1} parent=5 // pred_fallthru
        _
      %p142 = scmp.lt.s32.totalorder %s16, 9
      // Predicated region
      $region21: #{tpu_custom_call.1} parent=5 // pred_check
        %p143 = pneg %p142
      $region22: #{tpu_custom_call.1} parent=5 // pred_check_branch
        %145 = sbr.rel (%p143) target = $region24
      $region23: #{tpu_custom_call.1} parent=5 // pred_region
        // Predicated region
        $region25: #{tpu_custom_call.1} parent=23 // pred_check
          %p146 = pneg %p36
        $region26: #{tpu_custom_call.1} parent=23 // pred_check_branch
          %148 = sbr.rel (%p146) target = $region28
        $region27: #{tpu_custom_call.1} parent=23 // pred_region
          %s149 = sand.u32 %s26, 1
          %s150 = scalar_lea.sflag [#allocation3], %s149
          %s151 = sand.u32 %s26, 1
          %s152 = smul.addr %s151, 16
          %s153 = scalar_lea.vmem [#allocation2], %s152
          %s154 = smul.u32 4, %s16
          %156 = vsyncadd %s150, 0
          %s157 = smul.addr %s154, 4
          %s158 = scalar_lea.hbm %s0, %s157
          %s159 = sshll.u32 %s158, 4
          %s160 = int_to_ptr.hbm [resolvable:$true] %s159
          %s161 = sshll.u32 %s153, 4
          %s162 = int_to_ptr.vmem [resolvable:$true] %s161
          %167 = dma.hbm_to_vmem [thread:$0]  %s160, 256, %s162, %s150, 64, 64, 4
        $region28: #{tpu_custom_call.1} parent=23 // pred_fallthru
          _
      $region24: #{tpu_custom_call.1} parent=5 // pred_fallthru
        _
      %p168 = scmp.le.s32.totalorder 1, %s16
      %p169 = scmp.lt.s32.totalorder %s16, 10
      %p170 = pnand %p168, %p169
      %p171 = pneg %p170
      // Predicated region
      $region29: #{tpu_custom_call.1} parent=5 // pred_check
        _
      $region30: #{tpu_custom_call.1} parent=5 // pred_check_branch
        %173 = sbr.rel (%p170) target = $region32
      $region31: #{tpu_custom_call.1} parent=5 // pred_region
        %s174 = ssub.s32 %s16, 1
        %s175 = sand.u32 %s29, 1
        %s176 = scalar_lea.sflag [#allocation3], %s175
        %s177 = sand.u32 %s29, 1
        %s178 = smul.addr %s177, 16
        %s179 = scalar_lea.vmem [#allocation2], %s178
        // Predicated region
        $region33: #{tpu_custom_call.1} parent=31 // pred_check
          %p180 = pneg %p42
        $region34: #{tpu_custom_call.1} parent=31 // pred_check_branch
          %182 = sbr.rel (%p180) target = $region36
        $region35: #{tpu_custom_call.1} parent=31 // pred_region
          %184 = dma.done %s176, 256
        $region36: #{tpu_custom_call.1} parent=31 // pred_fallthru
          _
        // Predicated region
        $region37: #{tpu_custom_call.1} parent=31 // pred_check
          %p185 = pneg %p63
        $region38: #{tpu_custom_call.1} parent=31 // pred_check_branch
          %187 = sbr.rel (%p185) target = $region40
        $region39: #{tpu_custom_call.1} parent=31 // pred_region
          %189 = dma.done [#allocation6], 1024
        $region40: #{tpu_custom_call.1} parent=31 // pred_fallthru
          _
        %s190 = sand.u32 %s29, 1
        %s191 = scalar_lea.sflag [#allocation3], %s190
        %s192 = sand.u32 %s29, 1
        %s193 = smul.addr %s192, 16
        %s194 = scalar_lea.vmem [#allocation2], %s193
        %p195 = pneg %p42
        %p196 = pneg %p39
        %p197 = pneg %p63
        %p198 = pneg %p60
        %p199 = pneg %p84
        %p200 = pneg %p81
        %p201 = pneg %p110
        %p202 = pneg %p107
        %s203 = sand.u32 %s97, 1
        %s204 = scalar_lea.sflag [#allocation4], %s203
        %s205 = sand.u32 %s97, 1
        %s206 = smul.addr %s205, 16
        %s207 = scalar_lea.vmem [#allocation7], %s206
        %s208 = smul.u32 4, %s21
        %s209 = smul.u32 4, %s21
        %v210 = vld [vmem:[%s179] sm:$0xf]
        %v211 = vld [vmem:[%s179 + $0x4] sm:$0xf]
        %v212 = vld [vmem:[%s179 + $0x8] sm:$0xf]
        %v213 = vld [vmem:[%s179 + $0xc] sm:$0xf]
        %v214 = vld [vmem:[#allocation5] sm:$0xf]
        %v215 = vld [vmem:[#allocation5 + $0x4] sm:$0xf]
        %v216 = vld [vmem:[#allocation5 + $0x8] sm:$0xf]
        %v217 = vld [vmem:[#allocation5 + $0xc] sm:$0xf]
        %v218 = vld [vmem:[#allocation5 + $0x10] sm:$0xf]
        %v219 = vld [vmem:[#allocation5 + $0x14] sm:$0xf]
        %v220 = vld [vmem:[#allocation5 + $0x18] sm:$0xf]
        %v221 = vld [vmem:[#allocation5 + $0x1c] sm:$0xf]
        %v222 = vld [vmem:[#allocation5 + $0x20] sm:$0xf]
        %v223 = vld [vmem:[#allocation5 + $0x24] sm:$0xf]
        %v224 = vld [vmem:[#allocation5 + $0x28] sm:$0xf]
        %v225 = vld [vmem:[#allocation5 + $0x2c] sm:$0xf]
        %v226 = vld [vmem:[#allocation5 + $0x30] sm:$0xf]
        %v227 = vld [vmem:[#allocation5 + $0x34] sm:$0xf]
        %v228 = vld [vmem:[#allocation5 + $0x38] sm:$0xf]
        %v229 = vld [vmem:[#allocation5 + $0x3c] sm:$0xf]
        %v230 = vld [vmem:[%s2] sm:$0x1]
        %v232 = vperm.slane %v230, 0
        %v238 = vunpack.c.l.b16 %v210
        %v239 = vunpack.c.l.b16 %v211
        %v240 = vunpack.c.l.b16 %v212
        %v241 = vunpack.c.l.b16 %v213
        %v242 = vpack.c.b16 %v239, %v238
        %v243 = vpack.c.b16 %v241, %v240
        %v262 = vunpack.c.l.b16 %v214
        %v263 = vunpack.c.l.b16 %v215
        %v264 = vunpack.c.l.b16 %v216
        %v265 = vunpack.c.l.b16 %v217
        %v266 = vunpack.c.l.b16 %v218
        %v267 = vunpack.c.l.b16 %v219
        %v268 = vunpack.c.l.b16 %v220
        %v269 = vunpack.c.l.b16 %v221
        %v270 = vunpack.c.l.b16 %v222
        %v271 = vunpack.c.l.b16 %v223
        %v272 = vunpack.c.l.b16 %v224
        %v273 = vunpack.c.l.b16 %v225
        %v274 = vunpack.c.l.b16 %v226
        %v275 = vunpack.c.l.b16 %v227
        %v276 = vunpack.c.l.b16 %v228
        %v277 = vunpack.c.l.b16 %v229
        %v278 = vpack.c.b16 %v263, %v262
        %v279 = vpack.c.b16 %v265, %v264
        %v280 = vpack.c.b16 %v267, %v266
        %v281 = vpack.c.b16 %v269, %v268
        %v282 = vpack.c.b16 %v271, %v270
        %v283 = vpack.c.b16 %v273, %v272
        %v284 = vpack.c.b16 %v275, %v274
        %v285 = vpack.c.b16 %v277, %v276
        %294 = vmatpush.bf16.msra.mxu0 %v285
        %295 = vmatpush.bf16.msra.mxu0 %v284
        %296 = vmatpush.bf16.msra.mxu0 %v283
        %297 = vmatpush.bf16.msra.mxu0 %v282
        %298 = vmatpush.bf16.msra.mxu0 %v281
        %299 = vmatpush.bf16.msra.mxu0 %v280
        %300 = vmatpush.bf16.msra.mxu0 %v279
        %301 = vmatpush.bf16.msra.mxu0 %v278
        %302 = vmatmul.bf16.gmra.mxu0 %v242
        %v303 = vpop.f32.mrf.mxu0
        %v304 = vadd.f32 %v232, %v303
        %v305 = vpop.f32.mrf.mxu0
        %v306 = vadd.f32 %v232, %v305
        %307 = vmatmul.bf16.gmra.mxu0 %v243
        %v308 = vpop.f32.mrf.mxu0
        %v309 = vadd.f32 %v232, %v308
        %v310 = vpop.f32.mrf.mxu0
        %v311 = vadd.f32 %v232, %v310
        %312 = vdwg.mxu0
        %v313 = vpack.c.bf16 %v304, %v304
        %v314 = vpack.c.bf16 %v306, %v306
        %v315 = vpack.c.bf16 %v309, %v309
        %v316 = vpack.c.bf16 %v311, %v311
        %317 = vst [vmem:[%s207] sm:$0xf] %v313
        %318 = vst [vmem:[%s207 + $0x4] sm:$0xf] %v314
        %319 = vst [vmem:[%s207 + $0x8] sm:$0xf] %v315
        %320 = vst [vmem:[%s207 + $0xc] sm:$0xf] %v316
        %s321 = sand.u32 %s97, 1
        %s322 = scalar_lea.sflag [#allocation4], %s321
        %s323 = sand.u32 %s97, 1
        %s324 = smul.addr %s323, 16
        %s325 = scalar_lea.vmem [#allocation7], %s324
        // Predicated region
        $region41: #{tpu_custom_call.1} parent=31 // pred_check
          %p326 = pneg %p107
        $region42: #{tpu_custom_call.1} parent=31 // pred_check_branch
          %328 = sbr.rel (%p326) target = $region44
        $region43: #{tpu_custom_call.1} parent=31 // pred_region
          %s329 = smul.u32 4, %s21
          %331 = vsyncadd %s322, 0
          %s332 = smul.addr %s329, 4
          %s333 = scalar_lea.hbm %s3, %s332
          %s334 = sshll.u32 %s325, 4
          %s335 = int_to_ptr.vmem [resolvable:$true] %s334
          %s336 = sshll.u32 %s333, 4
          %s337 = int_to_ptr.hbm [resolvable:$true] %s336
          %342 = dma.vmem_to_hbm [thread:$0]  %s335, 256, %s337, %s322, 64, 64, 4
        $region44: #{tpu_custom_call.1} parent=31 // pred_fallthru
          _
      $region32: #{tpu_custom_call.1} parent=5 // pred_fallthru
        _
      %p343 = scmp.le.s32.totalorder 2, %s16
      // Predicated region
      $region45: #{tpu_custom_call.1} parent=5 // pred_check
        %p344 = pneg %p343
      $region46: #{tpu_custom_call.1} parent=5 // pred_check_branch
        %346 = sbr.rel (%p344) target = $region48
      $region47: #{tpu_custom_call.1} parent=5 // pred_region
        %s347 = ssub.s32 %s16, 2
        // Predicated region
        $region49: #{tpu_custom_call.1} parent=47 // pred_check
          %p348 = pneg %p113
        $region50: #{tpu_custom_call.1} parent=47 // pred_check_branch
          %350 = sbr.rel (%p348) target = $region52
        $region51: #{tpu_custom_call.1} parent=47 // pred_region
          %s351 = sand.u32 %s98, 1
          %s352 = scalar_lea.sflag [#allocation4], %s351
          %s353 = sand.u32 %s98, 1
          %s354 = smul.addr %s353, 16
          %s355 = scalar_lea.vmem [#allocation7], %s354
          %357 = dma.done %s352, 256
        $region52: #{tpu_custom_call.1} parent=47 // pred_fallthru
          _
      $region48: #{tpu_custom_call.1} parent=5 // pred_fallthru
        _
    $region6: #{tpu_custom_call.1} parent=1 // loop_footer
      %s20 = sadd.s32 1, %s16
    $region7: #{tpu_custom_call.1} parent=1 // loop_footer_branch
      %15 = sbr.rel target = $region3
    $region8: #{tpu_custom_call.1} parent=1 // loop_exit
      _
    %358 = vsyncpa [#allocation3], 1
    %s359 = scalar_lea.sflag [#allocation3], 1
    %360 = vsyncpa %s359, 1
    %361 = vsyncpa [#allocation6], 1
    %362 = vsyncpa [#allocation4], 1
    %s363 = scalar_lea.sflag [#allocation4], 1
    %364 = vsyncpa %s363, 1

</llo_original>
